<compile_context>
chip_gen: v5e
topology: v5e:2x2
jax: 0.10.0
libtpu: 0.0.40
codegen_flags: <defaults>
</compile_context>

<pallas_src>
import functools

import jax
import jax.numpy as jnp
from jax.experimental import pallas as pl
from jax.experimental.pallas import tpu as pltpu


def _label_smoothing_kernel(pred_ref, tgt_ref, out_ref, *, off_value,
                            confidence):
    pred = pred_ref[...].astype(jnp.float32)        # (TN, C), f32 math
    tgt = tgt_ref[...]                              # (TN, 1) int32

    # Numerically stable log-sum-exp pieces.
    m = jnp.max(pred, axis=-1, keepdims=True)       # (TN, 1)
    z = pred - m                                    # (TN, C)
    lse = jnp.log(jnp.sum(jnp.exp(z), axis=-1, keepdims=True))   # (TN, 1)

    # Single fused weighted reduce.  true_dist sums to 1, so
    #   loss_row = -sum_c(w_c * (z_c - lse)) = lse - sum_c(w_c * z_c).
    # NOTE: out-of-range target indices silently degenerate to w = off_value
    # everywhere (no error is raised).
    cls_ids = jax.lax.broadcasted_iota(jnp.int32, (1, z.shape[-1]), 1)  # (1,C)
    w = jnp.where(cls_ids == tgt, confidence, off_value)               # (TN,C)
    per_row = lse - jnp.sum(w * z, axis=-1, keepdims=True)             # (TN,1)

    out_ref[...] = per_row


def _tpu_vmem_capacity_bytes(default=64 * 1024 * 1024):
    """Per-core VMEM capacity; conservative 64 MiB fallback (v7x-sized)."""
    try:
        return int(pltpu.get_tpu_info().vmem_capacity_bytes)
    except Exception:  # query unavailable (e.g. interpret mode / old runtime)
        return default


def _choose_row_tile(n_rows, n_classes, in_itemsize, tile_budget_bytes,
                     min_grid_steps=8):
    """Largest multiple-of-8 row tile that fits the VMEM budget and still
    leaves >= min_grid_steps grid steps (>= 2 blocks per TC on v7x)."""
    # Double-buffered input tile + ~20 B/elem of live f32 (TN,C) intermediates
    # (f32 upcast, z, exp(z), weighted product, mask) + tiny per-row output.
    per_row_bytes = n_classes * (2 * in_itemsize + 20) + 16
    cap_vmem = tile_budget_bytes // per_row_bytes
    cap_steps = n_rows // min_grid_steps
    cap = max(8, min(cap_vmem, cap_steps, 2048))
    return max(8, (cap // 8) * 8)


def label_smoothing_loss(pred, target, *, num_classes, smoothing=0.0,
                         row_tile=None, vmem_limit_bytes=None):
    """pred: (N, C) float (f32 or bf16), target: (N,) int -> scalar mean loss."""
    confidence = 1.0 - smoothing
    off_value = smoothing / (num_classes - 1)

    N, C = pred.shape
    assert C == num_classes

    if vmem_limit_bytes is None:
        # ~5/8 of per-core VMEM: ~40 MiB on 64 MiB v7x, ~80 MiB on 128 MiB
        # v5e/v6e parts.
        vmem_limit_bytes = (_tpu_vmem_capacity_bytes() * 5) // 8
    if row_tile is None:
        row_tile = _choose_row_tile(N, C, jnp.dtype(pred.dtype).itemsize,
                                    (vmem_limit_bytes * 3) // 4)
    assert row_tile % 8 == 0, "row_tile must be a multiple of 8 (sublane tiling)"

    tgt2d = target.astype(jnp.int32).reshape(N, 1)

    kernel = functools.partial(
        _label_smoothing_kernel,
        off_value=float(off_value),
        confidence=float(confidence),
    )

    per_row = pl.pallas_call(
        kernel,
        out_shape=jax.ShapeDtypeStruct((N, 1), jnp.float32),
        grid_spec=pltpu.PrefetchScalarGridSpec(
            num_scalar_prefetch=0,
            grid=(pl.cdiv(N, row_tile),),
            in_specs=[
                pl.BlockSpec((row_tile, C), lambda i: (i, 0)),
                pl.BlockSpec((row_tile, 1), lambda i: (i, 0)),
            ],
            out_specs=pl.BlockSpec((row_tile, 1), lambda i: (i, 0)),
        ),
        compiler_params=pltpu.CompilerParams(
            dimension_semantics=("parallel",),
            vmem_limit_bytes=int(vmem_limit_bytes)),
    )(pred, tgt2d)

    # Mean over the batch (O(N) glue; negligible vs. the N*C pred read).
    return jnp.mean(per_row)


def _reference(pred, target, *, num_classes, smoothing):
    """Pure-JAX reference mirroring the PyTorch module."""
    confidence = 1.0 - smoothing
    logp = jax.nn.log_softmax(pred.astype(jnp.float32), axis=-1)
    true_dist = jnp.full_like(logp, smoothing / (num_classes - 1))
    true_dist = true_dist.at[jnp.arange(pred.shape[0]), target].set(confidence)
    return jnp.mean(jnp.sum(-true_dist * logp, axis=-1))


if __name__ == "__main__":
    key = jax.random.PRNGKey(0)
    k1, k2, k3, k4 = jax.random.split(key, 4)

    N, C = 64, 128          # lane-dense class axis; small demo shapes
    smoothing = 0.1

    target = jax.random.randint(k2, (N,), 0, C, dtype=jnp.int32)

    # f32 input (matches the torch module's dtype).
    pred_f32 = jax.random.normal(k1, (N, C), dtype=jnp.float32)
    loss_f32 = jax.block_until_ready(
        label_smoothing_loss(pred_f32, target, num_classes=C,
                             smoothing=smoothing))
    ref_f32 = _reference(pred_f32, target, num_classes=C, smoothing=smoothing)
    assert jnp.allclose(loss_f32, ref_f32, atol=1e-5, rtol=1e-5), (loss_f32, ref_f32)

    # bf16 input: halves the dominant HBM read; kernel math stays f32.
    pred_bf16 = pred_f32.astype(jnp.bfloat16)
    loss_bf16 = jax.block_until_ready(
        label_smoothing_loss(pred_bf16, target, num_classes=C,
                             smoothing=smoothing))
    ref_bf16 = _reference(pred_bf16, target, num_classes=C, smoothing=smoothing)
    assert jnp.allclose(loss_bf16, ref_bf16, atol=1e-4, rtol=1e-4), (loss_bf16, ref_bf16)

    # N not divisible by row_tile: exercises the pl.cdiv padded-last-block path.
    N2 = 40
    pred_odd = jax.random.normal(k3, (N2, C), dtype=jnp.float32)
    target_odd = jax.random.randint(k4, (N2,), 0, C, dtype=jnp.int32)
    loss_odd = jax.block_until_ready(
        label_smoothing_loss(pred_odd, target_odd, num_classes=C,
                             smoothing=smoothing, row_tile=16))
    ref_odd = _reference(pred_odd, target_odd, num_classes=C,
                         smoothing=smoothing)
    assert jnp.allclose(loss_odd, ref_odd, atol=1e-5, rtol=1e-5), (loss_odd, ref_odd)

    print("KERNEL_OK")
</pallas_src>

<mosaic_0001>
module attributes {stable_mosaic.version = 11 : i64} {
  func.func @_label_smoothing_kernel(%arg0: i32, %arg1: memref<8x128xf32, #tpu.memory_space<vmem>>, %arg2: memref<8x1xi32, #tpu.memory_space<vmem>>, %arg3: memref<8x1xf32, #tpu.memory_space<vmem>>) attributes {dimension_semantics = [#tpu.dimension_semantics<parallel>], iteration_bounds = array<i64: 8>, scalar_prefetch = 0 : i64, scratch_operands = 0 : i64, tpu.core_type = #tpu.core_type<tc>, window_params = [{transform_indices = @transform_0, window_bounds = array<i64: 8, 128>}, {transform_indices = @transform_1, window_bounds = array<i64: 8, 1>}, {transform_indices = @transform_2, window_bounds = array<i64: 8, 1>}]} {
    %c0 = arith.constant 0 : index
    %c0_0 = arith.constant 0 : index
    %0 = vector.load %arg1[%c0, %c0_0] : memref<8x128xf32, #tpu.memory_space<vmem>>, vector<8x128xf32>
    %c0_1 = arith.constant 0 : index
    %c0_2 = arith.constant 0 : index
    %1 = vector.load %arg2[%c0_1, %c0_2] : memref<8x1xi32, #tpu.memory_space<vmem>>, vector<8x1xi32>
    %cst = arith.constant dense<0xFF800000> : vector<8xf32>
    %2 = vector.multi_reduction <maximumf>, %0, %cst [1] : vector<8x128xf32> to vector<8xf32>
    %3 = vector.shape_cast %2 : vector<8xf32> to vector<8x1xf32>
    %4 = vector.broadcast %3 : vector<8x1xf32> to vector<8x128xf32>
    %5 = arith.subf %0, %4 : vector<8x128xf32>
    %6 = math.exp %5 : vector<8x128xf32>
    %cst_3 = arith.constant dense<0.000000e+00> : vector<8xf32>
    %7 = vector.multi_reduction <add>, %6, %cst_3 [1] : vector<8x128xf32> to vector<8xf32>
    %8 = vector.shape_cast %7 : vector<8xf32> to vector<8x1xf32>
    %9 = math.log %8 : vector<8x1xf32>
    %10 = tpu.iota {dimensions = array<i32: 1>} : vector<1x128xi32>
    %11 = vector.broadcast %10 : vector<1x128xi32> to vector<8x128xi32>
    %12 = vector.broadcast %1 : vector<8x1xi32> to vector<8x128xi32>
    %13 = arith.cmpi eq, %11, %12 : vector<8x128xi32>
    %cst_4 = arith.constant 0.899999976 : f32
    %cst_5 = arith.constant 7.87401571E-4 : f32
    %14 = vector.broadcast %cst_4 : f32 to vector<8x128xf32>
    %15 = vector.broadcast %cst_5 : f32 to vector<8x128xf32>
    %16 = arith.select %13, %14, %15 : vector<8x128xi1>, vector<8x128xf32>
    %17 = arith.mulf %16, %5 : vector<8x128xf32>
    %cst_6 = arith.constant dense<0.000000e+00> : vector<8xf32>
    %18 = vector.multi_reduction <add>, %17, %cst_6 [1] : vector<8x128xf32> to vector<8xf32>
    %19 = vector.shape_cast %18 : vector<8xf32> to vector<8x1xf32>
    %20 = arith.subf %9, %19 : vector<8x1xf32>
    %c0_7 = arith.constant 0 : index
    %c0_8 = arith.constant 0 : index
    %21 = vector.load %arg3[%c0_7, %c0_8] : memref<8x1xf32, #tpu.memory_space<vmem>>, vector<8x1xf32>
    tpu.vector_store %arg3[%c0_7, %c0_8], %20 {strides = array<i32>} : memref<8x1xf32, #tpu.memory_space<vmem>>, vector<8x1xf32>,
    return
  }
  func.func @transform_0(%arg0: i32) -> (i32, i32) {
    %c0_i32 = arith.constant 0 : i32
    %c0_i32_0 = arith.constant 0 : i32
    return %arg0, %c0_i32 : i32, i32
  }
  func.func @transform_1(%arg0: i32) -> (i32, i32) {
    %c0_i32 = arith.constant 0 : i32
    %c0_i32_0 = arith.constant 0 : i32
    return %arg0, %c0_i32 : i32, i32
  }
  func.func @transform_2(%arg0: i32) -> (i32, i32) {
    %c0_i32 = arith.constant 0 : i32
    %c0_i32_0 = arith.constant 0 : i32
    return %arg0, %c0_i32 : i32, i32
  }
}

</mosaic_0001>

<llo_original>
// kernel: tpu_custom_call.1
$region0: #{tpu_custom_call.1}
  #allocation0 [shape = 'u32[]', space=smem, size = 0x4, offset = 0x4, fixed_abs, tag = 'smem constant byte address 0x4 - core index']
  #allocation1 [shape = 'u32[72,128]{1,0:T(1,128)}', space=vmem, size = 0x9000, scoped, tag = 'internal scratch']
  %s0 = inlined_call_operand.vmem [shape: f32[64,128], index: 0, kind: input, shape index: {}]
  %s1 = inlined_call_operand.vmem [shape: s32[64,1], index: 1, kind: input, shape index: {}]
  %s2 = inlined_call_operand.vmem [shape: f32[64,1], index: 2, kind: output, shape index: {}]
  %s3 = sld [smem:[#allocation0]]
  $region41: #{tpu_custom_call.1} parent=0
    _
  %s5 = ssub.s32 1, %s3
  %s6 = scalar_select 0, %s5, %s3
  loop: start=0, step=1, limit=10
  $region2: #{tpu_custom_call.1} parent=0 // loop_pre_header
    _
  $region3: #{tpu_custom_call.1} parent=0 // loop_header
    %s8 = sphi 0, %s12
    %p9 = scmp.ge.s32.totalorder %s8, 10
    %s18 = sphi 0, %s20
    %s21 = sphi 0, %s18
    %s22 = sphi 0, %s21
    %s38 = sphi 0, %s22
    %s44 = sphi 0, %s46
    %s47 = sphi 0, %s44
    %s48 = sphi 0, %s47
    %s64 = sphi 0, %s48
    %s70 = sphi 0, %s72
    %s73 = sphi 0, %s70
    %s74 = sphi 0, %s73
    %s90 = sphi 0, %s74
  $region4: #{tpu_custom_call.1} parent=0 // loop_header_branch
    %11 = sbr.rel (%p9) target = $region8
  $region5: #{tpu_custom_call.1} parent=0 // loop_body
    %s13 = ssub.s32 %s8, 1
    %s14 = ssub.s32 %s8, 2
    %s15 = sadd.s32 %s8, 1
    %s16 = ssub.s32 %s8, %s15
    %p17 = scmp.eq.s32.totalorder %s16, 0
    %s19 = sadd.s32 %s18, 1
    %s20 = scalar_select %p17, %s18, %s19
    %p23 = pneg %p17
    %p24 = scmp.eq.s32.totalorder %s8, 7
    %p25 = por %p23, %p24
    %p26 = scmp.ne.s32.totalorder %s18, %s21
    %p27 = scmp.eq.s32.totalorder %s8, 0
    %p28 = por %p26, %p27
    %p29 = scmp.ne.s32.totalorder %s18, %s21
    %p30 = scmp.eq.s32.totalorder %s13, 7
    %p31 = por %p29, %p30
    %p32 = scmp.ne.s32.totalorder %s21, %s22
    %p33 = scmp.eq.s32.totalorder %s13, 0
    %p34 = por %p32, %p33
    %p35 = scmp.ne.s32.totalorder %s21, %s22
    %p36 = scmp.eq.s32.totalorder %s14, 7
    %p37 = por %p35, %p36
    %p39 = scmp.ne.s32.totalorder %s22, %s38
    %p40 = scmp.eq.s32.totalorder %s14, 0
    %p41 = por %p39, %p40
    %s42 = ssub.s32 %s8, %s15
    %p43 = scmp.eq.s32.totalorder %s42, 0
    %s45 = sadd.s32 %s44, 1
    %s46 = scalar_select %p43, %s44, %s45
    %p49 = pneg %p43
    %p50 = scmp.eq.s32.totalorder %s8, 7
    %p51 = por %p49, %p50
    %p52 = scmp.ne.s32.totalorder %s44, %s47
    %p53 = scmp.eq.s32.totalorder %s8, 0
    %p54 = por %p52, %p53
    %p55 = scmp.ne.s32.totalorder %s44, %s47
    %p56 = scmp.eq.s32.totalorder %s13, 7
    %p57 = por %p55, %p56
    %p58 = scmp.ne.s32.totalorder %s47, %s48
    %p59 = scmp.eq.s32.totalorder %s13, 0
    %p60 = por %p58, %p59
    %p61 = scmp.ne.s32.totalorder %s47, %s48
    %p62 = scmp.eq.s32.totalorder %s14, 7
    %p63 = por %p61, %p62
    %p65 = scmp.ne.s32.totalorder %s48, %s64
    %p66 = scmp.eq.s32.totalorder %s14, 0
    %p67 = por %p65, %p66
    %s68 = ssub.s32 %s8, %s15
    %p69 = scmp.eq.s32.totalorder %s68, 0
    %s71 = sadd.s32 %s70, 1
    %s72 = scalar_select %p69, %s70, %s71
    %p75 = pneg %p69
    %p76 = scmp.eq.s32.totalorder %s8, 7
    %p77 = por %p75, %p76
    %p78 = scmp.ne.s32.totalorder %s70, %s73
    %p79 = scmp.eq.s32.totalorder %s8, 0
    %p80 = por %p78, %p79
    %p81 = scmp.ne.s32.totalorder %s70, %s73
    %p82 = scmp.eq.s32.totalorder %s13, 7
    %p83 = por %p81, %p82
    %p84 = scmp.ne.s32.totalorder %s73, %s74
    %p85 = scmp.eq.s32.totalorder %s13, 0
    %p86 = por %p84, %p85
    %p87 = scmp.ne.s32.totalorder %s73, %s74
    %p88 = scmp.eq.s32.totalorder %s14, 7
    %p89 = por %p87, %p88
    %p91 = scmp.ne.s32.totalorder %s74, %s90
    %p92 = scmp.eq.s32.totalorder %s14, 0
    %p93 = por %p91, %p92
    %p94 = scmp.le.s32.totalorder 1, %s8
    %p95 = scmp.lt.s32.totalorder %s8, 9
    %p96 = pnand %p94, %p95
    %p97 = pneg %p96
    // Predicated region
    $region9: #{tpu_custom_call.1} parent=5 // pred_check
      _
    $region10: #{tpu_custom_call.1} parent=5 // pred_check_branch
      %99 = sbr.rel (%p96) target = $region12
    $region11: #{tpu_custom_call.1} parent=5 // pred_region
      %s100 = ssub.s32 %s8, 1
    $region12: #{tpu_custom_call.1} parent=5 // pred_fallthru
      _
    %p101 = scmp.lt.s32.totalorder %s8, 8
    // Predicated region
    $region13: #{tpu_custom_call.1} parent=5 // pred_check
      %p102 = pneg %p101
    $region14: #{tpu_custom_call.1} parent=5 // pred_check_branch
      %104 = sbr.rel (%p102) target = $region16
    $region15: #{tpu_custom_call.1} parent=5 // pred_region
      // Predicated region
      $region17: #{tpu_custom_call.1} parent=15 // pred_check
        %p105 = pneg %p28
      $region18: #{tpu_custom_call.1} parent=15 // pred_check_branch
        %107 = sbr.rel (%p105) target = $region20
      $region19: #{tpu_custom_call.1} parent=15 // pred_region
        %p108 = scmp.lt.s32.totalorder %s8, 7
        %s109 = scalar_select %p108, %s8, 7
        %s110 = smul.addr %s109, 8
        %s111 = scalar_lea.vmem %s0, %s110
      $region20: #{tpu_custom_call.1} parent=15 // pred_fallthru
        _
      // Predicated region
      $region21: #{tpu_custom_call.1} parent=15 // pred_check
        %p112 = pneg %p54
      $region22: #{tpu_custom_call.1} parent=15 // pred_check_branch
        %114 = sbr.rel (%p112) target = $region24
      $region23: #{tpu_custom_call.1} parent=15 // pred_region
        %p115 = scmp.lt.s32.totalorder %s8, 7
        %s116 = scalar_select %p115, %s8, 7
        %s117 = smul.addr %s116, 8
        %s118 = scalar_lea.vmem %s1, %s117
      $region24: #{tpu_custom_call.1} parent=15 // pred_fallthru
        _
    $region16: #{tpu_custom_call.1} parent=5 // pred_fallthru
      _
    %p119 = scmp.le.s32.totalorder 1, %s8
    %p120 = scmp.lt.s32.totalorder %s8, 9
    %p121 = pnand %p119, %p120
    %p122 = pneg %p121
    // Predicated region
    $region25: #{tpu_custom_call.1} parent=5 // pred_check
      _
    $region26: #{tpu_custom_call.1} parent=5 // pred_check_branch
      %124 = sbr.rel (%p121) target = $region28
    $region27: #{tpu_custom_call.1} parent=5 // pred_region
      %s125 = ssub.s32 %s8, 1
      %p126 = scmp.lt.s32.totalorder %s13, 7
      %s127 = scalar_select %p126, %s13, 7
      %s128 = smul.addr %s127, 8
      %s129 = scalar_lea.vmem %s0, %s128
      %p130 = pneg %p34
      %p131 = pneg %p31
      %p132 = scmp.lt.s32.totalorder %s13, 7
      %s133 = scalar_select %p132, %s13, 7
      %s134 = smul.addr %s133, 8
      %s135 = scalar_lea.vmem %s1, %s134
      %p136 = pneg %p60
      %p137 = pneg %p57
      %p138 = pneg %p86
      %p139 = pneg %p83
      %p140 = scmp.lt.s32.totalorder %s13, 7
      %s141 = scalar_select %p140, %s13, 7
      %s142 = smul.addr %s141, 8
      %s143 = scalar_lea.vmem %s2, %s142
      %p144 = scmp.lt.s32.totalorder %s13, 7
      %s145 = scalar_select %p144, %s13, 7
      %s146 = smul.addr %s145, 8
      %s147 = scalar_lea.vmem %s0, %s146
      %p148 = scmp.lt.s32.totalorder %s13, 7
      %s149 = scalar_select %p148, %s13, 7
      %s150 = smul.addr %s149, 8
      %s151 = scalar_lea.vmem %s1, %s150
      %p152 = scmp.lt.s32.totalorder %s13, 7
      %s153 = scalar_select %p152, %s13, 7
      %s154 = smul.addr %s153, 8
      %s155 = scalar_lea.vmem %s2, %s154
      %v156 = vld [vmem:[%s147] sm:$0xff]
      %v157 = vld [vmem:[%s151] sm:$0xff]
      %158 = vmax.xlane.f32.xlu0 %v156
      %v159 = vpop.xlane.xlu0 %158
      %v160 = vsub.f32 %v156, %v159
      %v161 = vmul.f32 %v160, 1.442695
      %v162 = vpow.pop %v161
      %163 = vadd.xlane.f32.xlu0 %v162
      %v164 = vpop.xlane.xlu0 %163
      %v165 = vlog2.pop %v164
      %v166 = vmul.f32 %v165, 0.6931472
      %v167 = vlaneseq
      %v168 = vand.u32 %v167, 127
      %169 = vset.pattern.permute.xlu0 0
      %170 = vperm.xlu0 %169, %v157
      %v171 = vpop.permute.xlu0 %170
      %vm172 = vcmp.eq.s32.totalorder %v168, %v171
      %v173 = vsel %vm172, 0.9, 0.0007874016
      %v174 = vmul.f32 %v173, %v160
      %175 = vadd.xlane.f32.xlu0 %v174
      %v176 = vpop.xlane.xlu0 %175
      %v177 = vsub.f32 %v166, %v176
      %vm178 = vcmask 7168
      %179 = vst.msk [vmem:[%s155] sm:$0xff] %vm178, %v177
      %p180 = scmp.lt.s32.totalorder %s13, 7
      %s181 = scalar_select %p180, %s13, 7
      %s182 = smul.addr %s181, 8
      %s183 = scalar_lea.vmem %s2, %s182
      // Predicated region
      $region29: #{tpu_custom_call.1} parent=27 // pred_check
        %p184 = pneg %p83
      $region30: #{tpu_custom_call.1} parent=27 // pred_check_branch
        %186 = sbr.rel (%p184) target = $region32
      $region31: #{tpu_custom_call.1} parent=27 // pred_region
        _
      $region32: #{tpu_custom_call.1} parent=27 // pred_fallthru
        _
    $region28: #{tpu_custom_call.1} parent=5 // pred_fallthru
      _
    %p187 = scmp.le.s32.totalorder 2, %s8
    // Predicated region
    $region33: #{tpu_custom_call.1} parent=5 // pred_check
      %p188 = pneg %p187
    $region34: #{tpu_custom_call.1} parent=5 // pred_check_branch
      %190 = sbr.rel (%p188) target = $region36
    $region35: #{tpu_custom_call.1} parent=5 // pred_region
      %s191 = ssub.s32 %s8, 2
      // Predicated region
      $region37: #{tpu_custom_call.1} parent=35 // pred_check
        %p192 = pneg %p89
      $region38: #{tpu_custom_call.1} parent=35 // pred_check_branch
        %194 = sbr.rel (%p192) target = $region40
      $region39: #{tpu_custom_call.1} parent=35 // pred_region
        %p195 = scmp.lt.s32.totalorder %s14, 7
        %s196 = scalar_select %p195, %s14, 7
        %s197 = smul.addr %s196, 8
        %s198 = scalar_lea.vmem %s2, %s197
      $region40: #{tpu_custom_call.1} parent=35 // pred_fallthru
        _
    $region36: #{tpu_custom_call.1} parent=5 // pred_fallthru
      _
  $region6: #{tpu_custom_call.1} parent=0 // loop_footer
    %s12 = sadd.s32 1, %s8
  $region7: #{tpu_custom_call.1} parent=0 // loop_footer_branch
    %7 = sbr.rel target = $region3
  $region8: #{tpu_custom_call.1} parent=0 // loop_exit
    _

</llo_original>
